<compile_context>
chip_gen: v7x
topology: tpu7x:2x2x1
jax: 0.10.0
libtpu: 0.0.40
codegen_flags: <defaults>
</compile_context>

<pallas_src>
import math
import functools

import jax
import jax.numpy as jnp
from jax import lax
from jax.experimental import pallas as pl
from jax.experimental.pallas import tpu as pltpu

LN_EPS = 1e-5
NEG_BIG = -1e30        # finite "-inf": avoids inf-inf -> NaN in online softmax


def _layer_norm(v, w, b):
    # f32 math; w, b are (1, C)
    mu = jnp.mean(v, axis=-1, keepdims=True)
    var = jnp.mean(jnp.square(v - mu), axis=-1, keepdims=True)
    return (v - mu) * lax.rsqrt(var + LN_EPS) * w + b


# ------------------------- kernel 1: LN1 + fused QKV --------------------------
def qkv_kernel(x_ref, ln1_w_ref, ln1_b_ref, w_qkv_ref, b_qkv_ref,
               q_ref, k_ref, v_ref, *, n_head: int):
    bf16 = jnp.bfloat16
    x = x_ref[...]                                   # (T, C) f32
    T, C = x.shape
    hd = C // n_head

    h = _layer_norm(x, ln1_w_ref[...], ln1_b_ref[...]).astype(bf16)
    # single lane-dense matmul (T, C) @ (C, 3C); Q columns pre-scaled on host
    qkv = jnp.dot(h, w_qkv_ref[...],
                  preferred_element_type=jnp.float32) + b_qkv_ref[...]

    def to_heads(a):                                 # (T, C) -> (nh, T, hd) bf16
        return jnp.transpose(a.astype(bf16).reshape(T, n_head, hd), (1, 0, 2))

    q_ref[...] = to_heads(qkv[:, 0 * C:1 * C])
    k_ref[...] = to_heads(qkv[:, 1 * C:2 * C])
    v_ref[...] = to_heads(qkv[:, 2 * C:3 * C])


# --------------------- kernel 2: flash attention + MLP ------------------------
def attn_mlp_kernel(x_q_ref, q_ref, k_ref, v_ref,
                    wproj_ref, bproj_ref, ln2_w_ref, ln2_b_ref,
                    w_fc_ref, b_fc_ref, w_mp_ref, b_mp_ref,
                    o_ref, *, n_head: int):
    f32, bf16 = jnp.float32, jnp.bfloat16
    x_q = x_q_ref[...]                               # (tq, C) f32
    q = q_ref[...]                                   # (nh, tq, hd) bf16, pre-scaled
    tq, C = x_q.shape
    nh, _, hd = q.shape
    tk = tq                                          # K tile == Q tile
    qi = pl.program_id(1)

    # ---- flash-style attention: only K tiles 0..qi are touched (causal skip)
    def kv_step(kt, carry):
        m, l, acc = carry
        k0 = pl.multiple_of(kt * tk, tk)
        k_t = k_ref[:, pl.ds(k0, tk), :]             # (nh, tk, hd) bf16
        v_t = v_ref[:, pl.ds(k0, tk), :]             # (nh, tk, hd) bf16
        s = jnp.einsum('hqd,hkd->hqk', q, k_t,
                       preferred_element_type=f32)   # (nh, tq, tk)
        row = lax.broadcasted_iota(jnp.int32, (tq, tk), 0) + qi * tq
        col = lax.broadcasted_iota(jnp.int32, (tq, tk), 1) + kt * tk
        s = jnp.where((col <= row)[None], s, jnp.float32(NEG_BIG))
        m_new = jnp.maximum(m, jnp.max(s, axis=-1, keepdims=True))
        alpha = jnp.exp(m - m_new)
        p = jnp.exp(s - m_new)
        l_new = alpha * l + jnp.sum(p, axis=-1, keepdims=True)
        acc_new = alpha * acc + jnp.einsum('hqk,hkd->hqd', p.astype(bf16), v_t,
                                           preferred_element_type=f32)
        return m_new, l_new, acc_new

    m0 = jnp.full((nh, tq, 1), NEG_BIG, f32)
    l0 = jnp.zeros((nh, tq, 1), f32)
    a0 = jnp.zeros((nh, tq, hd), f32)
    m, l, acc = lax.fori_loop(0, qi + 1, kv_step, (m0, l0, a0))

    o_h = (acc * pl.reciprocal(l, approx=True)).astype(bf16)   # (nh, tq, hd)
    # merge heads once, then one lane-dense c_proj matmul
    y_heads = jnp.transpose(o_h, (1, 0, 2)).reshape(tq, C)     # (tq, C) bf16
    y = jnp.dot(y_heads, wproj_ref[...],
                preferred_element_type=f32) + bproj_ref[...]
    x1 = x_q + y                                               # residual 1

    # ------------------------------- MLP branch -------------------------------
    h2 = _layer_norm(x1, ln2_w_ref[...], ln2_b_ref[...]).astype(bf16)
    f = jnp.dot(h2, w_fc_ref[...],
                preferred_element_type=f32) + b_fc_ref[...]    # (tq, 4C) f32
    g = 0.5 * f * (1.0 + lax.erf(f * (1.0 / math.sqrt(2.0))))  # exact GELU
    x2 = x1 + jnp.dot(g.astype(bf16), w_mp_ref[...],
                      preferred_element_type=f32) + b_mp_ref[...]
    o_ref[...] = x2.astype(o_ref.dtype)


# ---------------------------------- wrapper -----------------------------------
def block_forward(x, params, n_head):
    """x: (B, T, C); params from init_params (f32, weights stored as [in, out])."""
    B, T, C = x.shape
    assert C % n_head == 0
    hd = C // n_head
    H = 4 * C
    f32, bf16 = jnp.float32, jnp.bfloat16

    # query-tile size (divides T; prefer 128 for fine-grained causal skipping)
    tq = T
    for t in (128, 256, 64, 32, 16, 8):
        if T % t == 0:
            tq = t
            break
    n_qt = T // tq

    # ---- host-side repacking: bf16 matmul operands, softmax scale folded into Q
    scale = 1.0 / math.sqrt(hd)
    w_attn = params["w_attn"].astype(f32)                     # (C, 3C) [in,out]
    b_attn = params["b_attn"].reshape(1, 3 * C).astype(f32)
    col_scale = jnp.concatenate(
        [jnp.full((C,), scale, f32), jnp.ones((2 * C,), f32)])
    w_qkv = (w_attn * col_scale[None, :]).astype(bf16)        # (C, 3C) bf16
    b_qkv = (b_attn * col_scale[None, :]).astype(f32)         # (1, 3C) f32

    wproj = params["w_aproj"].astype(bf16)                    # (C, C)
    bproj = params["b_aproj"].reshape(1, C).astype(f32)
    w_fc = params["w_fc"].astype(bf16)                        # (C, 4C)
    b_fc = params["b_fc"].reshape(1, H).astype(f32)
    w_mp = params["w_mproj"].astype(bf16)                     # (4C, C)
    b_mp = params["b_mproj"].reshape(1, C).astype(f32)
    ln1_w = params["ln1_w"].reshape(1, C).astype(f32)
    ln1_b = params["ln1_b"].reshape(1, C).astype(f32)
    ln2_w = params["ln2_w"].reshape(1, C).astype(f32)
    ln2_b = params["ln2_b"].reshape(1, C).astype(f32)

    xf = x.astype(f32)

    # ---- pass 1: per-batch LN1 + fused QKV (once per batch row) --------------
    const1 = lambda b: (0, 0)
    q_hm, k_hm, v_hm = pl.pallas_call(
        functools.partial(qkv_kernel, n_head=n_head),
        out_shape=(jax.ShapeDtypeStruct((B, n_head, T, hd), bf16),) * 3,
        grid=(B,),
        in_specs=[
            pl.BlockSpec((None, T, C), lambda b: (b, 0, 0)),
            pl.BlockSpec((1, C), const1), pl.BlockSpec((1, C), const1),
            pl.BlockSpec((C, 3 * C), const1), pl.BlockSpec((1, 3 * C), const1),
        ],
        out_specs=(pl.BlockSpec((None, n_head, T, hd),
                                lambda b: (b, 0, 0, 0)),) * 3,
        compiler_params=pltpu.CompilerParams(
            dimension_semantics=("parallel",)),
    )(xf, ln1_w, ln1_b, w_qkv, b_qkv)

    # ---- pass 2: per-query-tile attention + MLP ------------------------------
    const2 = lambda b, i: (0, 0)
    out = pl.pallas_call(
        functools.partial(attn_mlp_kernel, n_head=n_head),
        out_shape=jax.ShapeDtypeStruct((B, T, C), jnp.float32),
        grid=(B, n_qt),
        in_specs=[
            pl.BlockSpec((None, tq, C), lambda b, i: (b, i, 0)),            # x tile
            pl.BlockSpec((None, n_head, tq, hd), lambda b, i: (b, 0, i, 0)),  # q tile
            pl.BlockSpec((None, n_head, T, hd), lambda b, i: (b, 0, 0, 0)),   # k full
            pl.BlockSpec((None, n_head, T, hd), lambda b, i: (b, 0, 0, 0)),   # v full
            pl.BlockSpec((C, C), const2), pl.BlockSpec((1, C), const2),       # c_proj
            pl.BlockSpec((1, C), const2), pl.BlockSpec((1, C), const2),       # ln2
            pl.BlockSpec((C, H), const2), pl.BlockSpec((1, H), const2),       # mlp fc
            pl.BlockSpec((H, C), const2), pl.BlockSpec((1, C), const2),       # mlp proj
        ],
        out_specs=pl.BlockSpec((None, tq, C), lambda b, i: (b, i, 0)),
        compiler_params=pltpu.CompilerParams(
            dimension_semantics=("parallel", "parallel")),
    )(xf, q_hm, k_hm, v_hm, wproj, bproj, ln2_w, ln2_b,
      w_fc, b_fc, w_mp, b_mp)
    return out


# ----------------------------- pure-JAX reference ------------------------------
def block_reference(x, params, n_head):
    B, T, C = x.shape
    hd = C // n_head

    def ln(v, w, b):
        mu = v.mean(-1, keepdims=True)
        var = ((v - mu) ** 2).mean(-1, keepdims=True)
        return (v - mu) / jnp.sqrt(var + LN_EPS) * w.reshape(1, 1, C) + b.reshape(1, 1, C)

    h = ln(x, params["ln1_w"], params["ln1_b"])
    qkv = h @ params["w_attn"] + params["b_attn"].reshape(1, 1, 3 * C)
    q, k, v = jnp.split(qkv, 3, axis=-1)
    q = q.reshape(B, T, n_head, hd).transpose(0, 2, 1, 3)
    k = k.reshape(B, T, n_head, hd).transpose(0, 2, 1, 3)
    v = v.reshape(B, T, n_head, hd).transpose(0, 2, 1, 3)
    att = (q @ jnp.swapaxes(k, -1, -2)) * (1.0 / math.sqrt(hd))
    mask = jnp.tril(jnp.ones((T, T), bool))
    att = jnp.where(mask, att, -jnp.inf)
    att = jax.nn.softmax(att, axis=-1)
    y = (att @ v).transpose(0, 2, 1, 3).reshape(B, T, C)
    y = y @ params["w_aproj"] + params["b_aproj"].reshape(1, 1, C)
    x = x + y
    h2 = ln(x, params["ln2_w"], params["ln2_b"])
    f = h2 @ params["w_fc"] + params["b_fc"].reshape(1, 1, 4 * C)
    f = jax.nn.gelu(f, approximate=False)
    m = f @ params["w_mproj"] + params["b_mproj"].reshape(1, 1, C)
    return x + m


def init_params(key, C):
    """Deterministic synthetic parameters (weights stored as [in, out], f32)."""
    ks = jax.random.split(key, 8)
    s = 0.02
    return {
        "ln1_w":   jnp.ones((1, C), jnp.float32),
        "ln1_b":   jnp.zeros((1, C), jnp.float32),
        "w_attn":  s * jax.random.normal(ks[0], (C, 3 * C), jnp.float32),
        "b_attn":  s * jax.random.normal(ks[1], (1, 3 * C), jnp.float32),
        "w_aproj": s * jax.random.normal(ks[2], (C, C), jnp.float32),
        "b_aproj": s * jax.random.normal(ks[3], (1, C), jnp.float32),
        "ln2_w":   jnp.ones((1, C), jnp.float32),
        "ln2_b":   jnp.zeros((1, C), jnp.float32),
        "w_fc":    s * jax.random.normal(ks[4], (C, 4 * C), jnp.float32),
        "b_fc":    s * jax.random.normal(ks[5], (1, 4 * C), jnp.float32),
        "w_mproj": s * jax.random.normal(ks[6], (4 * C, C), jnp.float32),
        "b_mproj": s * jax.random.normal(ks[7], (1, C), jnp.float32),
    }


if __name__ == "__main__":
    # Small shapes consistent with the module's (B, T, n_embd) convention.
    B, T, C, n_head = 2, 8, 32, 4

    key = jax.random.PRNGKey(0)
    kx, kp = jax.random.split(key)
    x = jax.random.normal(kx, (B, T, C), jnp.float32)
    params = init_params(kp, C)

    out = jax.block_until_ready(block_forward(x, params, n_head))
    ref = jax.block_until_ready(block_reference(x, params, n_head))

    assert out.shape == (B, T, C)
    assert bool(jnp.all(jnp.isfinite(out)))
    # bf16 matmul operands + approx reciprocal -> loose tolerance vs f32 ref
    assert bool(jnp.allclose(out, ref, atol=2e-2, rtol=2e-2))
    print("KERNEL_OK")
</pallas_src>

<mosaic_0001>
module attributes {stable_mosaic.version = 11 : i64} {
  func.func @qkv_kernel(%arg0: i32, %arg1: memref<1x8x32xf32, #tpu.memory_space<vmem>>, %arg2: memref<1x32xf32, #tpu.memory_space<vmem>>, %arg3: memref<1x32xf32, #tpu.memory_space<vmem>>, %arg4: memref<32x96xbf16, #tpu.memory_space<vmem>>, %arg5: memref<1x96xf32, #tpu.memory_space<vmem>>, %arg6: memref<1x4x8x8xbf16, #tpu.memory_space<vmem>>, %arg7: memref<1x4x8x8xbf16, #tpu.memory_space<vmem>>, %arg8: memref<1x4x8x8xbf16, #tpu.memory_space<vmem>>) attributes {dimension_semantics = [#tpu.dimension_semantics<parallel>], iteration_bounds = array<i64: 2>, scalar_prefetch = 0 : i64, scratch_operands = 0 : i64, tpu.core_type = #tpu.core_type<tc>, window_params = [{transform_indices = @transform_0, window_bounds = array<i64: 1, 8, 32>}, {pipeline_mode = #tpu.pipeline_mode<synchronous>, transform_indices = @transform_1, window_bounds = array<i64: 1, 32>}, {pipeline_mode = #tpu.pipeline_mode<synchronous>, transform_indices = @transform_2, window_bounds = array<i64: 1, 32>}, {pipeline_mode = #tpu.pipeline_mode<synchronous>, transform_indices = @transform_3, window_bounds = array<i64: 32, 96>}, {pipeline_mode = #tpu.pipeline_mode<synchronous>, transform_indices = @transform_4, window_bounds = array<i64: 1, 96>}, {transform_indices = @transform_5, window_bounds = array<i64: 1, 4, 8, 8>}, {transform_indices = @transform_6, window_bounds = array<i64: 1, 4, 8, 8>}, {transform_indices = @transform_7, window_bounds = array<i64: 1, 4, 8, 8>}]} {
    %c0 = arith.constant 0 : index
    %c0_0 = arith.constant 0 : index
    %c0_1 = arith.constant 0 : index
    %0 = vector.load %arg1[%c0, %c0_0, %c0_1] : memref<1x8x32xf32, #tpu.memory_space<vmem>>, vector<1x8x32xf32>
    %1 = vector.shape_cast %0 : vector<1x8x32xf32> to vector<8x32xf32>
    %c0_2 = arith.constant 0 : index
    %c0_3 = arith.constant 0 : index
    %2 = vector.load %arg2[%c0_2, %c0_3] : memref<1x32xf32, #tpu.memory_space<vmem>>, vector<1x32xf32>
    %c0_4 = arith.constant 0 : index
    %c0_5 = arith.constant 0 : index
    %3 = vector.load %arg3[%c0_4, %c0_5] : memref<1x32xf32, #tpu.memory_space<vmem>>, vector<1x32xf32>
    %cst = arith.constant dense<0.000000e+00> : vector<8xf32>
    %4 = vector.multi_reduction <add>, %1, %cst [1] : vector<8x32xf32> to vector<8xf32>
    %5 = vector.shape_cast %4 : vector<8xf32> to vector<8x1xf32>
    %cst_6 = arith.constant 3.200000e+01 : f32
    %6 = vector.broadcast %cst_6 : f32 to vector<8x1xf32>
    %7 = arith.divf %5, %6 : vector<8x1xf32>
    %8 = vector.broadcast %7 : vector<8x1xf32> to vector<8x32xf32>
    %9 = arith.subf %1, %8 : vector<8x32xf32>
    %10 = arith.mulf %9, %9 : vector<8x32xf32>
    %cst_7 = arith.constant dense<0.000000e+00> : vector<8xf32>
    %11 = vector.multi_reduction <add>, %10, %cst_7 [1] : vector<8x32xf32> to vector<8xf32>
    %12 = vector.shape_cast %11 : vector<8xf32> to vector<8x1xf32>
    %cst_8 = arith.constant 3.200000e+01 : f32
    %13 = vector.broadcast %cst_8 : f32 to vector<8x1xf32>
    %14 = arith.divf %12, %13 : vector<8x1xf32>
    %15 = vector.broadcast %7 : vector<8x1xf32> to vector<8x32xf32>
    %16 = arith.subf %1, %15 : vector<8x32xf32>
    %cst_9 = arith.constant 9.99999974E-6 : f32
    %17 = vector.broadcast %cst_9 : f32 to vector<8x1xf32>
    %18 = arith.addf %14, %17 : vector<8x1xf32>
    %19 = math.rsqrt %18 : vector<8x1xf32>
    %20 = vector.broadcast %19 : vector<8x1xf32> to vector<8x32xf32>
    %21 = arith.mulf %16, %20 : vector<8x32xf32>
    %22 = vector.broadcast %2 : vector<1x32xf32> to vector<8x32xf32>
    %23 = arith.mulf %21, %22 : vector<8x32xf32>
    %24 = vector.broadcast %3 : vector<1x32xf32> to vector<8x32xf32>
    %25 = arith.addf %23, %24 : vector<8x32xf32>
    %26 = arith.truncf %25 : vector<8x32xf32> to vector<8x32xbf16>
    %c0_10 = arith.constant 0 : index
    %c0_11 = arith.constant 0 : index
    %27 = vector.load %arg4[%c0_10, %c0_11] : memref<32x96xbf16, #tpu.memory_space<vmem>>, vector<32x96xbf16>
    %cst_12 = arith.constant dense<0.000000e+00> : vector<8x96xf32>
    %28 = tpu.matmul %26, %27, %cst_12 {dimension_numbers = #tpu.dot_dimension_numbers<[1], [0], [0], [1], [0, 0, 1, 1], [], []>} : vector<8x32xbf16>, vector<32x96xbf16>, vector<8x96xf32> -> vector<8x96xf32>
    %c0_13 = arith.constant 0 : index
    %c0_14 = arith.constant 0 : index
    %29 = vector.load %arg5[%c0_13, %c0_14] : memref<1x96xf32, #tpu.memory_space<vmem>>, vector<1x96xf32>
    %30 = vector.broadcast %29 : vector<1x96xf32> to vector<8x96xf32>
    %31 = arith.addf %28, %30 : vector<8x96xf32>
    %32 = vector.extract_strided_slice %31 {offsets = [0, 0], sizes = [8, 32], strides = [1, 1]} : vector<8x96xf32> to vector<8x32xf32>
    %33 = arith.truncf %32 : vector<8x32xf32> to vector<8x32xbf16>
    %34 = vector.shape_cast %33 : vector<8x32xbf16> to vector<8x4x8xbf16>
    %35 = tpu.transpose %34, [1, 0, 2] : vector<8x4x8xbf16> -> vector<4x8x8xbf16>
    %c0_15 = arith.constant 0 : index
    %c0_16 = arith.constant 0 : index
    %c0_17 = arith.constant 0 : index
    %c0_18 = arith.constant 0 : index
    %36 = vector.load %arg6[%c0_15, %c0_16, %c0_17, %c0_18] : memref<1x4x8x8xbf16, #tpu.memory_space<vmem>>, vector<1x4x8x8xbf16>
    %37 = vector.shape_cast %36 : vector<1x4x8x8xbf16> to vector<4x8x8xbf16>
    %38 = vector.shape_cast %35 : vector<4x8x8xbf16> to vector<1x4x8x8xbf16>
    tpu.vector_store %arg6[%c0_15, %c0_16, %c0_17, %c0_18], %38 {strides = array<i32>} : memref<1x4x8x8xbf16, #tpu.memory_space<vmem>>, vector<1x4x8x8xbf16>,
    %39 = vector.extract_strided_slice %31 {offsets = [0, 32], sizes = [8, 32], strides = [1, 1]} : vector<8x96xf32> to vector<8x32xf32>
    %40 = arith.truncf %39 : vector<8x32xf32> to vector<8x32xbf16>
    %41 = vector.shape_cast %40 : vector<8x32xbf16> to vector<8x4x8xbf16>
    %42 = tpu.transpose %41, [1, 0, 2] : vector<8x4x8xbf16> -> vector<4x8x8xbf16>
    %c0_19 = arith.constant 0 : index
    %c0_20 = arith.constant 0 : index
    %c0_21 = arith.constant 0 : index
    %c0_22 = arith.constant 0 : index
    %43 = vector.load %arg7[%c0_19, %c0_20, %c0_21, %c0_22] : memref<1x4x8x8xbf16, #tpu.memory_space<vmem>>, vector<1x4x8x8xbf16>
    %44 = vector.shape_cast %43 : vector<1x4x8x8xbf16> to vector<4x8x8xbf16>
    %45 = vector.shape_cast %42 : vector<4x8x8xbf16> to vector<1x4x8x8xbf16>
    tpu.vector_store %arg7[%c0_19, %c0_20, %c0_21, %c0_22], %45 {strides = array<i32>} : memref<1x4x8x8xbf16, #tpu.memory_space<vmem>>, vector<1x4x8x8xbf16>,
    %46 = vector.extract_strided_slice %31 {offsets = [0, 64], sizes = [8, 32], strides = [1, 1]} : vector<8x96xf32> to vector<8x32xf32>
    %47 = arith.truncf %46 : vector<8x32xf32> to vector<8x32xbf16>
    %48 = vector.shape_cast %47 : vector<8x32xbf16> to vector<8x4x8xbf16>
    %49 = tpu.transpose %48, [1, 0, 2] : vector<8x4x8xbf16> -> vector<4x8x8xbf16>
    %c0_23 = arith.constant 0 : index
    %c0_24 = arith.constant 0 : index
    %c0_25 = arith.constant 0 : index
    %c0_26 = arith.constant 0 : index
    %50 = vector.load %arg8[%c0_23, %c0_24, %c0_25, %c0_26] : memref<1x4x8x8xbf16, #tpu.memory_space<vmem>>, vector<1x4x8x8xbf16>
    %51 = vector.shape_cast %50 : vector<1x4x8x8xbf16> to vector<4x8x8xbf16>
    %52 = vector.shape_cast %49 : vector<4x8x8xbf16> to vector<1x4x8x8xbf16>
    tpu.vector_store %arg8[%c0_23, %c0_24, %c0_25, %c0_26], %52 {strides = array<i32>} : memref<1x4x8x8xbf16, #tpu.memory_space<vmem>>, vector<1x4x8x8xbf16>,
    return
  }
  func.func @transform_0(%arg0: i32) -> (i32, i32, i32) {
    %c0_i32 = arith.constant 0 : i32
    %c0_i32_0 = arith.constant 0 : i32
    %c0_i32_1 = arith.constant 0 : i32
    return %arg0, %c0_i32, %c0_i32_0 : i32, i32, i32
  }
  func.func @transform_1(%arg0: i32) -> (i32, i32) {
    %c0_i32 = arith.constant 0 : i32
    %c0_i32_0 = arith.constant 0 : i32
    %c0_i32_1 = arith.constant 0 : i32
    return %c0_i32, %c0_i32_0 : i32, i32
  }
  func.func @transform_2(%arg0: i32) -> (i32, i32) {
    %c0_i32 = arith.constant 0 : i32
    %c0_i32_0 = arith.constant 0 : i32
    %c0_i32_1 = arith.constant 0 : i32
    return %c0_i32, %c0_i32_0 : i32, i32
  }
  func.func @transform_3(%arg0: i32) -> (i32, i32) {
    %c0_i32 = arith.constant 0 : i32
    %c0_i32_0 = arith.constant 0 : i32
    %c0_i32_1 = arith.constant 0 : i32
    return %c0_i32, %c0_i32_0 : i32, i32
  }
  func.func @transform_4(%arg0: i32) -> (i32, i32) {
    %c0_i32 = arith.constant 0 : i32
    %c0_i32_0 = arith.constant 0 : i32
    %c0_i32_1 = arith.constant 0 : i32
    return %c0_i32, %c0_i32_0 : i32, i32
  }
  func.func @transform_5(%arg0: i32) -> (i32, i32, i32, i32) {
    %c0_i32 = arith.constant 0 : i32
    %c0_i32_0 = arith.constant 0 : i32
    %c0_i32_1 = arith.constant 0 : i32
    %c0_i32_2 = arith.constant 0 : i32
    return %arg0, %c0_i32, %c0_i32_0, %c0_i32_1 : i32, i32, i32, i32
  }
  func.func @transform_6(%arg0: i32) -> (i32, i32, i32, i32) {
    %c0_i32 = arith.constant 0 : i32
    %c0_i32_0 = arith.constant 0 : i32
    %c0_i32_1 = arith.constant 0 : i32
    %c0_i32_2 = arith.constant 0 : i32
    return %arg0, %c0_i32, %c0_i32_0, %c0_i32_1 : i32, i32, i32, i32
  }
  func.func @transform_7(%arg0: i32) -> (i32, i32, i32, i32) {
    %c0_i32 = arith.constant 0 : i32
    %c0_i32_0 = arith.constant 0 : i32
    %c0_i32_1 = arith.constant 0 : i32
    %c0_i32_2 = arith.constant 0 : i32
    return %arg0, %c0_i32, %c0_i32_0, %c0_i32_1 : i32, i32, i32, i32
  }
}

</mosaic_0001>

<llo_original>
// kernel: tpu_custom_call.1
$region0: #{tpu_custom_call.1}
  #allocation0 [shape = 'u32[]', space=smem, size = 0x4, offset = 0x4, fixed_abs, tag = 'smem constant byte address 0x4 - core index']
  #allocation1 [shape = 'u32[144,128]{1,0:T(1,128)}', space=vmem, size = 0x12000, scoped, tag = 'internal scratch']
  %s0 = inlined_call_operand.hbm [shape: f32[2,8,32], index: 0, kind: input, shape index: {}]
  %s1 = inlined_call_operand.vmem [shape: f32[1,32], index: 1, kind: input, shape index: {}]
  %s2 = inlined_call_operand.vmem [shape: f32[1,32], index: 2, kind: input, shape index: {}]
  %s3 = inlined_call_operand.hbm [shape: bf16[32,96], index: 3, kind: input, shape index: {}]
  %s4 = inlined_call_operand.vmem [shape: f32[1,96], index: 4, kind: input, shape index: {}]
  %s5 = inlined_call_operand.hbm [shape: bf16[2,4,8,8], index: 5, kind: output, shape index: {0}]
  %s6 = inlined_call_operand.hbm [shape: bf16[2,4,8,8], index: 6, kind: output, shape index: {1}]
  %s7 = inlined_call_operand.hbm [shape: bf16[2,4,8,8], index: 7, kind: output, shape index: {2}]
  %8 = xla_tuple %s5, %s6, %s7
  %s9 = sld [smem:[#allocation0]]
  $region77: #{tpu_custom_call.1} parent=0
    _
  %s11 = ssub.s32 1, %s9
  %s12 = scalar_select 0, %s11, %s9
  $region1: #{tpu_custom_call.1} parent=0
    #allocation2 [shape = 'u8[8192]{0}', space=vmem, size = 0x2000, scoped, tag = 'input window, operand 0']
    #allocation3 [shape = 's32[2]{0}', space=sflag, size = 0x8, scoped, tag = 'scoped memory for tpu_custom_call.1']
    #allocation4 [shape = 's32[2]{0}', space=sflag, size = 0x8, scoped, tag = 'scoped memory for tpu_custom_call.1']
    #allocation5 [shape = 'u8[8192]{0}', space=vmem, size = 0x2000, scoped, tag = 'input window, operand 3, single buffered']
    #allocation6 [shape = 's32[1]{0}', space=sflag, size = 0x4, scoped, tag = 'scoped memory for tpu_custom_call.1']
    #allocation7 [shape = 'u8[16384]{0}', space=vmem, size = 0x4000, scoped, tag = 'output window, operand 0']
    #allocation8 [shape = 'u8[16384]{0}', space=vmem, size = 0x4000, scoped, tag = 'output window, operand 1']
    #allocation9 [shape = 's32[2]{0}', space=sflag, size = 0x8, scoped, tag = 'scoped memory for tpu_custom_call.1']
    #allocation10 [shape = 'u8[16384]{0}', space=vmem, size = 0x4000, scoped, tag = 'output window, operand 2']
    %13 = vsyncpa [#allocation3], 0
    %s14 = scalar_lea.sflag [#allocation3], 1
    %15 = vsyncpa %s14, 0
    %16 = vsyncpa [#allocation6], 0
    %17 = vsyncpa [#allocation4], 0
    %s18 = scalar_lea.sflag [#allocation4], 1
    %19 = vsyncpa %s18, 0
    %20 = vsyncpa [#allocation9], 0
    %s21 = scalar_lea.sflag [#allocation9], 1
    %22 = vsyncpa %s21, 0
    loop: start=0, step=1, limit=4
    $region2: #{tpu_custom_call.1} parent=1 // loop_pre_header
      _
    $region3: #{tpu_custom_call.1} parent=1 // loop_header
      %s24 = sphi 0, %s28
      %p25 = scmp.ge.s32.totalorder %s24, 4
      %s34 = sphi 0, %s36
      %s37 = sphi 0, %s34
      %s38 = sphi 0, %s37
      %s54 = sphi 0, %s38
      %s58 = sphi 0, %s58
      %s60 = sphi 0, %s58
      %s61 = sphi 0, %s60
      %s75 = sphi 0, %s61
      %s79 = sphi 0, %s79
      %s81 = sphi 0, %s79
      %s82 = sphi 0, %s81
      %s96 = sphi 0, %s82
      %s100 = sphi 0, %s100
      %s102 = sphi 0, %s100
      %s103 = sphi 0, %s102
      %s117 = sphi 0, %s103
      %s121 = sphi 0, %s121
      %s123 = sphi 0, %s121
      %s124 = sphi 0, %s123
      %s138 = sphi 0, %s124
      %s144 = sphi 0, %s146
      %s147 = sphi 0, %s144
      %s148 = sphi 0, %s147
      %s164 = sphi 0, %s148
      %s170 = sphi 0, %s172
      %s173 = sphi 0, %s170
      %s174 = sphi 0, %s173
      %s190 = sphi 0, %s174
      %s196 = sphi 0, %s198
      %s199 = sphi 0, %s196
      %s200 = sphi 0, %s199
      %s216 = sphi 0, %s200
    $region4: #{tpu_custom_call.1} parent=1 // loop_header_branch
      %27 = sbr.rel (%p25) target = $region8
    $region5: #{tpu_custom_call.1} parent=1 // loop_body
      %s29 = ssub.s32 %s24, 1
      %s30 = ssub.s32 %s24, 2
      %s31 = sadd.s32 %s24, 1
      %s32 = ssub.s32 %s24, %s31
      %p33 = scmp.eq.s32.totalorder %s32, 0
      %s35 = sadd.s32 %s34, 1
      %s36 = scalar_select %p33, %s34, %s35
      %p39 = pneg %p33
      %p40 = scmp.eq.s32.totalorder %s24, 1
      %p41 = por %p39, %p40
      %p42 = scmp.ne.s32.totalorder %s34, %s37
      %p43 = scmp.eq.s32.totalorder %s24, 0
      %p44 = por %p42, %p43
      %p45 = scmp.ne.s32.totalorder %s34, %s37
      %p46 = scmp.eq.s32.totalorder %s29, 1
      %p47 = por %p45, %p46
      %p48 = scmp.ne.s32.totalorder %s37, %s38
      %p49 = scmp.eq.s32.totalorder %s29, 0
      %p50 = por %p48, %p49
      %p51 = scmp.ne.s32.totalorder %s37, %s38
      %p52 = scmp.eq.s32.totalorder %s30, 1
      %p53 = por %p51, %p52
      %p55 = scmp.ne.s32.totalorder %s38, %s54
      %p56 = scmp.eq.s32.totalorder %s30, 0
      %p57 = por %p55, %p56
      %s59 = sadd.s32 %s58, 1
      %p62 = scmp.eq.s32.totalorder %s24, 1
      %p63 = scmp.ne.s32.totalorder %s58, %s60
      %p64 = scmp.eq.s32.totalorder %s24, 0
      %p65 = por %p63, %p64
      %p66 = scmp.ne.s32.totalorder %s58, %s60
      %p67 = scmp.eq.s32.totalorder %s29, 1
      %p68 = por %p66, %p67
      %p69 = scmp.ne.s32.totalorder %s60, %s61
      %p70 = scmp.eq.s32.totalorder %s29, 0
      %p71 = por %p69, %p70
      %p72 = scmp.ne.s32.totalorder %s60, %s61
      %p73 = scmp.eq.s32.totalorder %s30, 1
      %p74 = por %p72, %p73
      %p76 = scmp.ne.s32.totalorder %s61, %s75
      %p77 = scmp.eq.s32.totalorder %s30, 0
      %p78 = por %p76, %p77
      %s80 = sadd.s32 %s79, 1
      %p83 = scmp.eq.s32.totalorder %s24, 1
      %p84 = scmp.ne.s32.totalorder %s79, %s81
      %p85 = scmp.eq.s32.totalorder %s24, 0
      %p86 = por %p84, %p85
      %p87 = scmp.ne.s32.totalorder %s79, %s81
      %p88 = scmp.eq.s32.totalorder %s29, 1
      %p89 = por %p87, %p88
      %p90 = scmp.ne.s32.totalorder %s81, %s82
      %p91 = scmp.eq.s32.totalorder %s29, 0
      %p92 = por %p90, %p91
      %p93 = scmp.ne.s32.totalorder %s81, %s82
      %p94 = scmp.eq.s32.totalorder %s30, 1
      %p95 = por %p93, %p94
      %p97 = scmp.ne.s32.totalorder %s82, %s96
      %p98 = scmp.eq.s32.totalorder %s30, 0
      %p99 = por %p97, %p98
      %s101 = sadd.s32 %s100, 1
      %p104 = scmp.eq.s32.totalorder %s24, 1
      %p105 = scmp.ne.s32.totalorder %s100, %s102
      %p106 = scmp.eq.s32.totalorder %s24, 0
      %p107 = por %p105, %p106
      %p108 = scmp.ne.s32.totalorder %s100, %s102
      %p109 = scmp.eq.s32.totalorder %s29, 1
      %p110 = por %p108, %p109
      %p111 = scmp.ne.s32.totalorder %s102, %s103
      %p112 = scmp.eq.s32.totalorder %s29, 0
      %p113 = por %p111, %p112
      %p114 = scmp.ne.s32.totalorder %s102, %s103
      %p115 = scmp.eq.s32.totalorder %s30, 1
      %p116 = por %p114, %p115
      %p118 = scmp.ne.s32.totalorder %s103, %s117
      %p119 = scmp.eq.s32.totalorder %s30, 0
      %p120 = por %p118, %p119
      %s122 = sadd.s32 %s121, 1
      %p125 = scmp.eq.s32.totalorder %s24, 1
      %p126 = scmp.ne.s32.totalorder %s121, %s123
      %p127 = scmp.eq.s32.totalorder %s24, 0
      %p128 = por %p126, %p127
      %p129 = scmp.ne.s32.totalorder %s121, %s123
      %p130 = scmp.eq.s32.totalorder %s29, 1
      %p131 = por %p129, %p130
      %p132 = scmp.ne.s32.totalorder %s123, %s124
      %p133 = scmp.eq.s32.totalorder %s29, 0
      %p134 = por %p132, %p133
      %p135 = scmp.ne.s32.totalorder %s123, %s124
      %p136 = scmp.eq.s32.totalorder %s30, 1
      %p137 = por %p135, %p136
      %p139 = scmp.ne.s32.totalorder %s124, %s138
      %p140 = scmp.eq.s32.totalorder %s30, 0
      %p141 = por %p139, %p140
      %s142 = ssub.s32 %s24, %s31
      %p143 = scmp.eq.s32.totalorder %s142, 0
      %s145 = sadd.s32 %s144, 1
      %s146 = scalar_select %p143, %s144, %s145
      %p149 = pneg %p143
      %p150 = scmp.eq.s32.totalorder %s24, 1
      %p151 = por %p149, %p150
      %p152 = scmp.ne.s32.totalorder %s144, %s147
      %p153 = scmp.eq.s32.totalorder %s24, 0
      %p154 = por %p152, %p153
      %p155 = scmp.ne.s32.totalorder %s144, %s147
      %p156 = scmp.eq.s32.totalorder %s29, 1
      %p157 = por %p155, %p156
      %p158 = scmp.ne.s32.totalorder %s147, %s148
      %p159 = scmp.eq.s32.totalorder %s29, 0
      %p160 = por %p158, %p159
      %p161 = scmp.ne.s32.totalorder %s147, %s148
      %p162 = scmp.eq.s32.totalorder %s30, 1
      %p163 = por %p161, %p162
      %p165 = scmp.ne.s32.totalorder %s148, %s164
      %p166 = scmp.eq.s32.totalorder %s30, 0
      %p167 = por %p165, %p166
      %s168 = ssub.s32 %s24, %s31
      %p169 = scmp.eq.s32.totalorder %s168, 0
      %s171 = sadd.s32 %s170, 1
      %s172 = scalar_select %p169, %s170, %s171
      %p175 = pneg %p169
      %p176 = scmp.eq.s32.totalorder %s24, 1
      %p177 = por %p175, %p176
      %p178 = scmp.ne.s32.totalorder %s170, %s173
      %p179 = scmp.eq.s32.totalorder %s24, 0
      %p180 = por %p178, %p179
      %p181 = scmp.ne.s32.totalorder %s170, %s173
      %p182 = scmp.eq.s32.totalorder %s29, 1
      %p183 = por %p181, %p182
      %p184 = scmp.ne.s32.totalorder %s173, %s174
      %p185 = scmp.eq.s32.totalorder %s29, 0
      %p186 = por %p184, %p185
      %p187 = scmp.ne.s32.totalorder %s173, %s174
      %p188 = scmp.eq.s32.totalorder %s30, 1
      %p189 = por %p187, %p188
      %p191 = scmp.ne.s32.totalorder %s174, %s190
      %p192 = scmp.eq.s32.totalorder %s30, 0
      %p193 = por %p191, %p192
      %s194 = ssub.s32 %s24, %s31
      %p195 = scmp.eq.s32.totalorder %s194, 0
      %s197 = sadd.s32 %s196, 1
      %s198 = scalar_select %p195, %s196, %s197
      %p201 = pneg %p195
      %p202 = scmp.eq.s32.totalorder %s24, 1
      %p203 = por %p201, %p202
      %p204 = scmp.ne.s32.totalorder %s196, %s199
      %p205 = scmp.eq.s32.totalorder %s24, 0
      %p206 = por %p204, %p205
      %p207 = scmp.ne.s32.totalorder %s196, %s199
      %p208 = scmp.eq.s32.totalorder %s29, 1
      %p209 = por %p207, %p208
      %p210 = scmp.ne.s32.totalorder %s199, %s200
      %p211 = scmp.eq.s32.totalorder %s29, 0
      %p212 = por %p210, %p211
      %p213 = scmp.ne.s32.totalorder %s199, %s200
      %p214 = scmp.eq.s32.totalorder %s30, 1
      %p215 = por %p213, %p214
      %p217 = scmp.ne.s32.totalorder %s200, %s216
      %p218 = scmp.eq.s32.totalorder %s30, 0
      %p219 = por %p217, %p218
      %p220 = scmp.le.s32.totalorder 1, %s24
      %p221 = scmp.lt.s32.totalorder %s24, 3
      %p222 = pnand %p220, %p221
      %p223 = pneg %p222
      // Predicated region
      $region9: #{tpu_custom_call.1} parent=5 // pred_check
        _
      $region10: #{tpu_custom_call.1} parent=5 // pred_check_branch
        %225 = sbr.rel (%p222) target = $region12
      $region11: #{tpu_custom_call.1} parent=5 // pred_region
        %s226 = ssub.s32 %s24, 1
        // Predicated region
        $region13: #{tpu_custom_call.1} parent=11 // pred_check
          %p227 = pneg %p71
        $region14: #{tpu_custom_call.1} parent=11 // pred_check_branch
          %229 = sbr.rel (%p227) target = $region16
        $region15: #{tpu_custom_call.1} parent=11 // pred_region
          _
        $region16: #{tpu_custom_call.1} parent=11 // pred_fallthru
          _
        // Predicated region
        $region17: #{tpu_custom_call.1} parent=11 // pred_check
          %p230 = pneg %p92
        $region18: #{tpu_custom_call.1} parent=11 // pred_check_branch
          %232 = sbr.rel (%p230) target = $region20
        $region19: #{tpu_custom_call.1} parent=11 // pred_region
          _
        $region20: #{tpu_custom_call.1} parent=11 // pred_fallthru
          _
        // Predicated region
        $region21: #{tpu_custom_call.1} parent=11 // pred_check
          %p233 = pneg %p113
        $region22: #{tpu_custom_call.1} parent=11 // pred_check_branch
          %235 = sbr.rel (%p233) target = $region24
        $region23: #{tpu_custom_call.1} parent=11 // pred_region
          %s237 = ssub.s32 256, 256
          %238 = vsyncadd [#allocation6], %s237
          %s239 = sshll.u32 [#allocation5], 4
          %s240 = int_to_ptr.vmem [resolvable:$true] %s239
          %245 = dma.hbm_to_vmem [thread:$0]  %s3, 256, %s240, [#allocation6], 64, 64, 4
        $region24: #{tpu_custom_call.1} parent=11 // pred_fallthru
          _
        // Predicated region
        $region25: #{tpu_custom_call.1} parent=11 // pred_check
          %p246 = pneg %p134
        $region26: #{tpu_custom_call.1} parent=11 // pred_check_branch
          %248 = sbr.rel (%p246) target = $region28
        $region27: #{tpu_custom_call.1} parent=11 // pred_region
          _
        $region28: #{tpu_custom_call.1} parent=11 // pred_fallthru
          _
      $region12: #{tpu_custom_call.1} parent=5 // pred_fallthru
        _
      %p249 = scmp.lt.s32.totalorder %s24, 2
      // Predicated region
      $region29: #{tpu_custom_call.1} parent=5 // pred_check
        %p250 = pneg %p249
      $region30: #{tpu_custom_call.1} parent=5 // pred_check_branch
        %252 = sbr.rel (%p250) target = $region32
      $region31: #{tpu_custom_call.1} parent=5 // pred_region
        // Predicated region
        $region33: #{tpu_custom_call.1} parent=31 // pred_check
          %p253 = pneg %p44
        $region34: #{tpu_custom_call.1} parent=31 // pred_check_branch
          %255 = sbr.rel (%p253) target = $region36
        $region35: #{tpu_custom_call.1} parent=31 // pred_region
          %s256 = sand.u32 %s34, 1
          %s257 = scalar_lea.sflag [#allocation3], %s256
          %s258 = sand.u32 %s34, 1
          %s259 = smul.addr %s258, 8
          %s260 = scalar_lea.vmem [#allocation2], %s259
          %s262 = ssub.s32 128, 128
          %263 = vsyncadd %s257, %s262
          %s264 = smul.addr %s24, 128
          %s265 = scalar_lea.hbm %s0, %s264
          %s267 = sshll.u32 %s260, 4
          %s268 = int_to_ptr.vmem [resolvable:$true] %s267
          %270 = dma.hbm_to_vmem [thread:$0]  %s265, 128, %s268, %s257
        $region36: #{tpu_custom_call.1} parent=31 // pred_fallthru
          _
      $region32: #{tpu_custom_call.1} parent=5 // pred_fallthru
        _
      %p271 = scmp.le.s32.totalorder 1, %s24
      %p272 = scmp.lt.s32.totalorder %s24, 3
      %p273 = pnand %p271, %p272
      %p274 = pneg %p273
      // Predicated region
      $region37: #{tpu_custom_call.1} parent=5 // pred_check
        _
      $region38: #{tpu_custom_call.1} parent=5 // pred_check_branch
        %276 = sbr.rel (%p273) target = $region40
      $region39: #{tpu_custom_call.1} parent=5 // pred_region
        %s277 = ssub.s32 %s24, 1
        %s278 = sand.u32 %s37, 1
        %s279 = scalar_lea.sflag [#allocation3], %s278
        %s280 = sand.u32 %s37, 1
        %s281 = smul.addr %s280, 8
        %s282 = scalar_lea.vmem [#allocation2], %s281
        // Predicated region
        $region41: #{tpu_custom_call.1} parent=39 // pred_check
          %p283 = pneg %p50
        $region42: #{tpu_custom_call.1} parent=39 // pred_check_branch
          %285 = sbr.rel (%p283) target = $region44
        $region43: #{tpu_custom_call.1} parent=39 // pred_region
          %286 = dma.done %s279, 128
        $region44: #{tpu_custom_call.1} parent=39 // pred_fallthru
          _
        // Predicated region
        $region45: #{tpu_custom_call.1} parent=39 // pred_check
          %p287 = pneg %p113
        $region46: #{tpu_custom_call.1} parent=39 // pred_check_branch
          %289 = sbr.rel (%p287) target = $region48
        $region47: #{tpu_custom_call.1} parent=39 // pred_region
          %290 = dma.done [#allocation6], 256
        $region48: #{tpu_custom_call.1} parent=39 // pred_fallthru
          _
        %s291 = sand.u32 %s37, 1
        %s292 = scalar_lea.sflag [#allocation3], %s291
        %s293 = sand.u32 %s37, 1
        %s294 = smul.addr %s293, 8
        %s295 = scalar_lea.vmem [#allocation2], %s294
        %p296 = pneg %p50
        %p297 = pneg %p47
        %p298 = pneg %p71
        %p299 = pneg %p68
        %p300 = pneg %p92
        %p301 = pneg %p89
        %p302 = pneg %p113
        %p303 = pneg %p110
        %p304 = pneg %p134
        %p305 = pneg %p131
        %p306 = pneg %p160
        %p307 = pneg %p157
        %s308 = sand.u32 %s147, 1
        %s309 = scalar_lea.sflag [#allocation4], %s308
        %s310 = sand.u32 %s147, 1
        %s311 = smul.addr %s310, 16
        %s312 = scalar_lea.vmem [#allocation7], %s311
        %p313 = pneg %p186
        %p314 = pneg %p183
        %s315 = sand.u32 %s29, 1
        %s316 = scalar_lea.sflag [#allocation9], %s315
        %s317 = sand.u32 %s173, 1
        %s318 = smul.addr %s317, 16
        %s319 = scalar_lea.vmem [#allocation8], %s318
        %p320 = pneg %p212
        %p321 = pneg %p209
        %s322 = sand.u32 %s29, 1
        %s323 = scalar_lea.sflag [#allocation9], %s322
        %s324 = sand.u32 %s199, 1
        %s325 = smul.addr %s324, 16
        %s326 = scalar_lea.vmem [#allocation10], %s325
        %v328 = vld [vmem:[%s282] sm:$0xff]
        %v329 = vld [vmem:[%s1] sm:$0x1]
        %v330 = vld [vmem:[%s2] sm:$0x1]
        %vm331 = vcmask 261120
        %v332 = vsel %vm331, %v328, 0.0
        %333 = vadd.xlane.f32.xlu0 %v332
        %v334 = vpop.xlane.xlu0 %333
        %v335 = vrcp.pop 32.0
        %v336 = vmul.f32 %v334, %v335
        %v337 = vsub.f32 %v328, %v336
        %v338 = vmul.f32 %v337, %v337
        %v339 = vsel %vm331, %v338, 0.0
        %340 = vadd.xlane.f32.xlu0 %v339
        %v341 = vpop.xlane.xlu0 %340
        %v342 = vmul.f32 %v341, %v335
        %v343 = vadd.f32 %v342, 1e-05
        %v344 = vrsqrt.pop %v343
        %v345 = vmul.f32 %v337, %v344
        %v347 = vlaneseq
        %v348 = vshrl.u32 %v347, 7
        %v349 = vsub.s32 0, %v348
        %v350 = vrot.slane %v329, %v349
        %v352 = vmul.f32 %v345, %v350
        %v354 = vlaneseq
        %v355 = vshrl.u32 %v354, 7
        %v356 = vsub.s32 0, %v355
        %v357 = vrot.slane %v330, %v356
        %v359 = vadd.f32 %v352, %v357
        %v360 = vpack.c.bf16 %v359, %v359
        %v361 = vld [vmem:[#allocation5] sm:$0xf]
        %v362 = vld [vmem:[#allocation5 + $0x4] sm:$0xf]
        %v363 = vld [vmem:[#allocation5 + $0x8] sm:$0xf]
        %v364 = vld [vmem:[#allocation5 + $0xc] sm:$0xf]
        %v365 = vld [vmem:[%s4] sm:$0x1]
        %v367 = vlaneseq
        %v368 = vshrl.u32 %v367, 7
        %v369 = vsub.s32 0, %v368
        %v370 = vrot.slane %v365, %v369
        %v376 = vunpack.c.l.b16 %v361
        %v377 = vunpack.c.l.b16 %v362
        %v378 = vunpack.c.l.b16 %v363
        %v379 = vunpack.c.l.b16 %v364
        %v380 = vpack.c.b16 %v377, %v376
        %v381 = vpack.c.b16 %v379, %v378
        %v385 = vsel %vm331, %v360, 0
        %387 = vmatprep.subr.bf16.mxu0 0
        %388 = vmatpush1.bf16.msra.mxu0 %v380
        %389 = vmatprep.subr.bf16.mxu0 0
        %390 = vmatpush1.bf16.msra.mxu0 %v381
        %391 = vmatprep.subr.bf16.mxu0 0
        %392 = vmatpush1.bf16.msra.mxu0 0
        %393 = vmatprep.subr.bf16.mxu0 0
        %394 = vmatpush1.bf16.msra.mxu0 0
        %395 = vmatprep.subr.bf16.mxu0 0
        %396 = vmatpush1.bf16.msra.mxu0 0
        %397 = vmatprep.subr.bf16.mxu0 0
        %398 = vmatpush1.bf16.msra.mxu0 0
        %399 = vmatprep.subr.bf16.mxu0 0
        %400 = vmatpush1.bf16.msra.mxu0 0
        %401 = vmatprep.subr.bf16.mxu0 0
        %402 = vmatpush1.bf16.msra.mxu0 0
        %403 = vmatprep.subr.bf16.mxu0 0
        %404 = vmatpush1.bf16.msra.mxu0 0
        %405 = vmatprep.subr.bf16.mxu0 0
        %406 = vmatpush1.bf16.msra.mxu0 0
        %407 = vmatprep.subr.bf16.mxu0 0
        %408 = vmatpush1.bf16.msra.mxu0 0
        %409 = vmatprep.subr.bf16.mxu0 0
        %410 = vmatpush1.bf16.msra.mxu0 0
        %411 = vmatprep.subr.bf16.mxu0 0
        %412 = vmatpush1.bf16.msra.mxu0 0
        %413 = vmatprep.subr.bf16.mxu0 0
        %414 = vmatpush1.bf16.msra.mxu0 0
        %415 = vmatprep.subr.bf16.mxu0 0
        %416 = vmatpush1.bf16.msra.mxu0 0
        %417 = vmatprep.subr.bf16.mxu0 0
        %418 = vmatpush1.bf16.msra.mxu0 0
        %419 = vmatprep.mubr.bf16.mxu0 0
        %420 = vmatmul.mubr.bf16.gmra.mrb[0].mxu0 %v385
        %v421 = vpop.f32.mrb[0].mxu0
        %v422 = vadd.f32 %v370, %v421
        %v423 = vpop.f32.mrb[0].mxu0
        %v424 = vpop.f32.mrb[0].mxu0
        %v425 = vpop.f32.mrb[0].mxu0
        %426 = vdwg.mxu0
        %v427 = vpack.c.bf16 %v422, %v422
        %429 = vrot.lane.b32.xlu0 %v427, 120
        %v430 = vpop.permute.xlu0 %429
        %431 = vrot.lane.b32.xlu0 %v427, 112
        %v432 = vpop.permute.xlu0 %431
        %433 = vrot.lane.b32.xlu0 %v427, 104
        %v434 = vpop.permute.xlu0 %433
        %v436 = vunpack.c.l.s4 1983009808
        %v437 = vunpack.c.0.s8 %v436
        %v438 = vlaneseq
        %v439 = vshrl.u32 %v438, 7
        %v440 = vsub.s32 %v437, %v439
        %v441 = vrot.slane %v427, %v440
        %v444 = vunpack.c.l.s4 1983009808
        %v445 = vunpack.c.0.s8 %v444
        %v446 = vlaneseq
        %v447 = vshrl.u32 %v446, 7
        %v448 = vsub.s32 %v445, %v447
        %v449 = vrot.slane %v432, %v448
        %v450 = vcombine.low %v441, %v449
        %v451 = vcombine.high %v441, %v449
        %v453 = vunpack.c.l.s4 1934713408
        %v454 = vunpack.c.0.s8 %v453
        %v455 = vlaneseq
        %v456 = vshrl.u32 %v455, 7
        %v457 = vsub.s32 %v454, %v456
        %v458 = vrot.slane %v450, %v457
        %v460 = vunpack.c.l.s4 1934713408
        %v461 = vunpack.c.0.s8 %v460
        %v462 = vlaneseq
        %v463 = vshrl.u32 %v462, 7
        %v464 = vsub.s32 %v461, %v463
        %v465 = vrot.slane %v451, %v464
        %v466 = vcombine.high %v458, 0
        %v467 = vcombine.high %v465, 0
        %v470 = vunpack.c.l.s4 1983009808
        %v471 = vunpack.c.0.s8 %v470
        %v472 = vlaneseq
        %v473 = vshrl.u32 %v472, 7
        %v474 = vsub.s32 %v471, %v473
        %v475 = vrot.slane %v430, %v474
        %v478 = vunpack.c.l.s4 1983009808
        %v479 = vunpack.c.0.s8 %v478
        %v480 = vlaneseq
        %v481 = vshrl.u32 %v480, 7
        %v482 = vsub.s32 %v479, %v481
        %v483 = vrot.slane %v434, %v482
        %v484 = vcombine.low %v475, %v483
        %v485 = vcombine.high %v475, %v483
        %v487 = vunpack.c.l.s4 1934713408
        %v488 = vunpack.c.0.s8 %v487
        %v489 = vlaneseq
        %v490 = vshrl.u32 %v489, 7
        %v491 = vsub.s32 %v488, %v490
        %v492 = vrot.slane %v484, %v491
        %v494 = vunpack.c.l.s4 1934713408
        %v495 = vunpack.c.0.s8 %v494
        %v496 = vlaneseq
        %v497 = vshrl.u32 %v496, 7
        %v498 = vsub.s32 %v495, %v497
        %v499 = vrot.slane %v485, %v498
        %v500 = vcombine.high %v492, 0
        %v501 = vcombine.high %v499, 0
        %v504 = vpack.i.b16 %v492, %v458
        %v506 = vshrl.u32 %v458, 16
        %v507 = vshrl.u32 %v492, 16
        %v508 = vpack.i.b16 %v507, %v506
        %v512 = vpack.i.b16 %v500, %v466
        %v514 = vshrl.u32 %v466, 16
        %v515 = vshrl.u32 %v500, 16
        %v516 = vpack.i.b16 %v515, %v514
        %v520 = vpack.i.b16 %v499, %v465
        %v522 = vshrl.u32 %v465, 16
        %v523 = vshrl.u32 %v499, 16
        %v524 = vpack.i.b16 %v523, %v522
        %v528 = vpack.i.b16 %v501, %v467
        %v530 = vshrl.u32 %v467, 16
        %v531 = vshrl.u32 %v501, 16
        %v532 = vpack.i.b16 %v531, %v530
        %v534 = vcombine.low %v504, %v520
        %v536 = vunpack.c.l.s4 1983009808
        %v537 = vunpack.c.0.s8 %v536
        %v538 = vlaneseq
        %v539 = vshrl.u32 %v538, 7
        %v540 = vsub.s32 %v537, %v539
        %v541 = vrot.slane %v534, %v540
        %v542 = vcombine.low %v512, %v528
        %v544 = vunpack.c.l.s4 1983009808
        %v545 = vunpack.c.0.s8 %v544
        %v546 = vlaneseq
        %v547 = vshrl.u32 %v546, 7
        %v548 = vsub.s32 %v545, %v547
        %v549 = vrot.slane %v542, %v548
        %v550 = vcombine.low %v541, %v549
        %v552 = vunpack.c.l.s4 1934713408
        %v553 = vunpack.c.0.s8 %v552
        %v554 = vlaneseq
        %v555 = vshrl.u32 %v554, 7
        %v556 = vsub.s32 %v553, %v555
        %v557 = vrot.slane %v550, %v556
        %v558 = vcombine.high %v557, 0
        %v559 = vcombine.low %v508, %v524
        %v561 = vunpack.c.l.s4 1983009808
        %v562 = vunpack.c.0.s8 %v561
        %v563 = vlaneseq
        %v564 = vshrl.u32 %v563, 7
        %v565 = vsub.s32 %v562, %v564
        %v566 = vrot.slane %v559, %v565
        %v567 = vcombine.low %v516, %v532
        %v569 = vunpack.c.l.s4 1983009808
        %v570 = vunpack.c.0.s8 %v569
        %v571 = vlaneseq
        %v572 = vshrl.u32 %v571, 7
        %v573 = vsub.s32 %v570, %v572
        %v574 = vrot.slane %v567, %v573
        %v575 = vcombine.low %v566, %v574
        %v577 = vunpack.c.l.s4 1934713408
        %v578 = vunpack.c.0.s8 %v577
        %v579 = vlaneseq
        %v580 = vshrl.u32 %v579, 7
        %v581 = vsub.s32 %v578, %v580
        %v582 = vrot.slane %v575, %v581
        %v583 = vcombine.high %v582, 0
        %v586 = vpack.i.b16 %v582, %v557
        %v588 = vshrl.u32 %v557, 16
        %v589 = vshrl.u32 %v582, 16
        %v590 = vpack.i.b16 %v589, %v588
        %v594 = vpack.i.b16 %v583, %v558
        %v596 = vshrl.u32 %v558, 16
        %v597 = vshrl.u32 %v583, 16
        %v598 = vpack.i.b16 %v597, %v596
        %vm600 = vcmask 60416
        %601 = vst.msk [vmem:[%s312] sm:$0xf] %vm600, %v586
        %602 = vst.msk [vmem:[%s312 + $0x4] sm:$0xf] %vm600, %v590
        %603 = vst.msk [vmem:[%s312 + $0x8] sm:$0xf] %vm600, %v594
        %604 = vst.msk [vmem:[%s312 + $0xc] sm:$0xf] %vm600, %v598
        %605 = vrot.lane.b32.xlu0 %v427, 96
        %v606 = vpop.permute.xlu0 %605
        %607 = vrot.lane.b32.xlu0 %v430, 96
        %v608 = vpop.permute.xlu0 %607
        %609 = vrot.lane.b32.xlu0 %v432, 96
        %v610 = vpop.permute.xlu0 %609
        %611 = vrot.lane.b32.xlu0 %v434, 96
        %v612 = vpop.permute.xlu0 %611
        %v615 = vunpack.c.l.s4 1983009808
        %v616 = vunpack.c.0.s8 %v615
        %v617 = vlaneseq
        %v618 = vshrl.u32 %v617, 7
        %v619 = vsub.s32 %v616, %v618
        %v620 = vrot.slane %v606, %v619
        %v623 = vunpack.c.l.s4 1983009808
        %v624 = vunpack.c.0.s8 %v623
        %v625 = vlaneseq
        %v626 = vshrl.u32 %v625, 7
        %v627 = vsub.s32 %v624, %v626
        %v628 = vrot.slane %v610, %v627
        %v629 = vcombine.low %v620, %v628
        %v630 = vcombine.high %v620, %v628
        %v632 = vunpack.c.l.s4 1934713408
        %v633 = vunpack.c.0.s8 %v632
        %v634 = vlaneseq
        %v635 = vshrl.u32 %v634, 7
        %v636 = vsub.s32 %v633, %v635
        %v637 = vrot.slane %v629, %v636
        %v639 = vunpack.c.l.s4 1934713408
        %v640 = vunpack.c.0.s8 %v639
        %v641 = vlaneseq
        %v642 = vshrl.u32 %v641, 7
        %v643 = vsub.s32 %v640, %v642
        %v644 = vrot.slane %v630, %v643
        %v645 = vcombine.high %v637, 0
        %v646 = vcombine.high %v644, 0
        %v649 = vunpack.c.l.s4 1983009808
        %v650 = vunpack.c.0.s8 %v649
        %v651 = vlaneseq
        %v652 = vshrl.u32 %v651, 7
        %v653 = vsub.s32 %v650, %v652
        %v654 = vrot.slane %v608, %v653
        %v657 = vunpack.c.l.s4 1983009808
        %v658 = vunpack.c.0.s8 %v657
        %v659 = vlaneseq
        %v660 = vshrl.u32 %v659, 7
        %v661 = vsub.s32 %v658, %v660
        %v662 = vrot.slane %v612, %v661
        %v663 = vcombine.low %v654, %v662
        %v664 = vcombine.high %v654, %v662
        %v666 = vunpack.c.l.s4 1934713408
        %v667 = vunpack.c.0.s8 %v666
        %v668 = vlaneseq
        %v669 = vshrl.u32 %v668, 7
        %v670 = vsub.s32 %v667, %v669
        %v671 = vrot.slane %v663, %v670
        %v673 = vunpack.c.l.s4 1934713408
        %v674 = vunpack.c.0.s8 %v673
        %v675 = vlaneseq
        %v676 = vshrl.u32 %v675, 7
        %v677 = vsub.s32 %v674, %v676
        %v678 = vrot.slane %v664, %v677
        %v679 = vcombine.high %v671, 0
        %v680 = vcombine.high %v678, 0
        %v683 = vpack.i.b16 %v671, %v637
        %v685 = vshrl.u32 %v637, 16
        %v686 = vshrl.u32 %v671, 16
        %v687 = vpack.i.b16 %v686, %v685
        %v691 = vpack.i.b16 %v679, %v645
        %v693 = vshrl.u32 %v645, 16
        %v694 = vshrl.u32 %v679, 16
        %v695 = vpack.i.b16 %v694, %v693
        %v699 = vpack.i.b16 %v678, %v644
        %v701 = vshrl.u32 %v644, 16
        %v702 = vshrl.u32 %v678, 16
        %v703 = vpack.i.b16 %v702, %v701
        %v707 = vpack.i.b16 %v680, %v646
        %v709 = vshrl.u32 %v646, 16
        %v710 = vshrl.u32 %v680, 16
        %v711 = vpack.i.b16 %v710, %v709
        %v713 = vcombine.low %v683, %v699
        %v715 = vunpack.c.l.s4 1983009808
        %v716 = vunpack.c.0.s8 %v715
        %v717 = vlaneseq
        %v718 = vshrl.u32 %v717, 7
        %v719 = vsub.s32 %v716, %v718
        %v720 = vrot.slane %v713, %v719
        %v721 = vcombine.low %v691, %v707
        %v723 = vunpack.c.l.s4 1983009808
        %v724 = vunpack.c.0.s8 %v723
        %v725 = vlaneseq
        %v726 = vshrl.u32 %v725, 7
        %v727 = vsub.s32 %v724, %v726
        %v728 = vrot.slane %v721, %v727
        %v729 = vcombine.low %v720, %v728
        %v731 = vunpack.c.l.s4 1934713408
        %v732 = vunpack.c.0.s8 %v731
        %v733 = vlaneseq
        %v734 = vshrl.u32 %v733, 7
        %v735 = vsub.s32 %v732, %v734
        %v736 = vrot.slane %v729, %v735
        %v737 = vcombine.high %v736, 0
        %v738 = vcombine.low %v687, %v703
        %v740 = vunpack.c.l.s4 1983009808
        %v741 = vunpack.c.0.s8 %v740
        %v742 = vlaneseq
        %v743 = vshrl.u32 %v742, 7
        %v744 = vsub.s32 %v741, %v743
        %v745 = vrot.slane %v738, %v744
        %v746 = vcombine.low %v695, %v711
        %v748 = vunpack.c.l.s4 1983009808
        %v749 = vunpack.c.0.s8 %v748
        %v750 = vlaneseq
        %v751 = vshrl.u32 %v750, 7
        %v752 = vsub.s32 %v749, %v751
        %v753 = vrot.slane %v746, %v752
        %v754 = vcombine.low %v745, %v753
        %v756 = vunpack.c.l.s4 1934713408
        %v757 = vunpack.c.0.s8 %v756
        %v758 = vlaneseq
        %v759 = vshrl.u32 %v758, 7
        %v760 = vsub.s32 %v757, %v759
        %v761 = vrot.slane %v754, %v760
        %v762 = vcombine.high %v761, 0
        %v765 = vpack.i.b16 %v761, %v736
        %v767 = vshrl.u32 %v736, 16
        %v768 = vshrl.u32 %v761, 16
        %v769 = vpack.i.b16 %v768, %v767
        %v773 = vpack.i.b16 %v762, %v737
        %v775 = vshrl.u32 %v737, 16
        %v776 = vshrl.u32 %v762, 16
        %v777 = vpack.i.b16 %v776, %v775
        %779 = vst.msk [vmem:[%s319] sm:$0xf] %vm600, %v765
        %780 = vst.msk [vmem:[%s319 + $0x4] sm:$0xf] %vm600, %v769
        %781 = vst.msk [vmem:[%s319 + $0x8] sm:$0xf] %vm600, %v773
        %782 = vst.msk [vmem:[%s319 + $0xc] sm:$0xf] %vm600, %v777
        %783 = vrot.lane.b32.xlu0 %v427, 64
        %v784 = vpop.permute.xlu0 %783
        %785 = vrot.lane.b32.xlu0 %v430, 64
        %v786 = vpop.permute.xlu0 %785
        %787 = vrot.lane.b32.xlu0 %v432, 64
        %v788 = vpop.permute.xlu0 %787
        %789 = vrot.lane.b32.xlu0 %v434, 64
        %v790 = vpop.permute.xlu0 %789
        %v793 = vunpack.c.l.s4 1983009808
        %v794 = vunpack.c.0.s8 %v793
        %v795 = vlaneseq
        %v796 = vshrl.u32 %v795, 7
        %v797 = vsub.s32 %v794, %v796
        %v798 = vrot.slane %v784, %v797
        %v801 = vunpack.c.l.s4 1983009808
        %v802 = vunpack.c.0.s8 %v801
        %v803 = vlaneseq
        %v804 = vshrl.u32 %v803, 7
        %v805 = vsub.s32 %v802, %v804
        %v806 = vrot.slane %v788, %v805
        %v807 = vcombine.low %v798, %v806
        %v808 = vcombine.high %v798, %v806
        %v810 = vunpack.c.l.s4 1934713408
        %v811 = vunpack.c.0.s8 %v810
        %v812 = vlaneseq
        %v813 = vshrl.u32 %v812, 7
        %v814 = vsub.s32 %v811, %v813
        %v815 = vrot.slane %v807, %v814
        %v817 = vunpack.c.l.s4 1934713408
        %v818 = vunpack.c.0.s8 %v817
        %v819 = vlaneseq
        %v820 = vshrl.u32 %v819, 7
        %v821 = vsub.s32 %v818, %v820
        %v822 = vrot.slane %v808, %v821
        %v823 = vcombine.high %v815, 0
        %v824 = vcombine.high %v822, 0
        %v827 = vunpack.c.l.s4 1983009808
        %v828 = vunpack.c.0.s8 %v827
        %v829 = vlaneseq
        %v830 = vshrl.u32 %v829, 7
        %v831 = vsub.s32 %v828, %v830
        %v832 = vrot.slane %v786, %v831
        %v835 = vunpack.c.l.s4 1983009808
        %v836 = vunpack.c.0.s8 %v835
        %v837 = vlaneseq
        %v838 = vshrl.u32 %v837, 7
        %v839 = vsub.s32 %v836, %v838
        %v840 = vrot.slane %v790, %v839
        %v841 = vcombine.low %v832, %v840
        %v842 = vcombine.high %v832, %v840
        %v844 = vunpack.c.l.s4 1934713408
        %v845 = vunpack.c.0.s8 %v844
        %v846 = vlaneseq
        %v847 = vshrl.u32 %v846, 7
        %v848 = vsub.s32 %v845, %v847
        %v849 = vrot.slane %v841, %v848
        %v851 = vunpack.c.l.s4 1934713408
        %v852 = vunpack.c.0.s8 %v851
        %v853 = vlaneseq
        %v854 = vshrl.u32 %v853, 7
        %v855 = vsub.s32 %v852, %v854
        %v856 = vrot.slane %v842, %v855
        %v857 = vcombine.high %v849, 0
        %v858 = vcombine.high %v856, 0
        %v861 = vpack.i.b16 %v849, %v815
        %v863 = vshrl.u32 %v815, 16
        %v864 = vshrl.u32 %v849, 16
        %v865 = vpack.i.b16 %v864, %v863
        %v869 = vpack.i.b16 %v857, %v823
        %v871 = vshrl.u32 %v823, 16
        %v872 = vshrl.u32 %v857, 16
        %v873 = vpack.i.b16 %v872, %v871
        %v877 = vpack.i.b16 %v856, %v822
        %v879 = vshrl.u32 %v822, 16
        %v880 = vshrl.u32 %v856, 16
        %v881 = vpack.i.b16 %v880, %v879
        %v885 = vpack.i.b16 %v858, %v824
        %v887 = vshrl.u32 %v824, 16
        %v888 = vshrl.u32 %v858, 16
        %v889 = vpack.i.b16 %v888, %v887
        %v891 = vcombine.low %v861, %v877
        %v893 = vunpack.c.l.s4 1983009808
        %v894 = vunpack.c.0.s8 %v893
        %v895 = vlaneseq
        %v896 = vshrl.u32 %v895, 7
        %v897 = vsub.s32 %v894, %v896
        %v898 = vrot.slane %v891, %v897
        %v899 = vcombine.low %v869, %v885
        %v901 = vunpack.c.l.s4 1983009808
        %v902 = vunpack.c.0.s8 %v901
        %v903 = vlaneseq
        %v904 = vshrl.u32 %v903, 7
        %v905 = vsub.s32 %v902, %v904
        %v906 = vrot.slane %v899, %v905
        %v907 = vcombine.low %v898, %v906
        %v909 = vunpack.c.l.s4 1934713408
        %v910 = vunpack.c.0.s8 %v909
        %v911 = vlaneseq
        %v912 = vshrl.u32 %v911, 7
        %v913 = vsub.s32 %v910, %v912
        %v914 = vrot.slane %v907, %v913
        %v915 = vcombine.high %v914, 0
        %v916 = vcombine.low %v865, %v881
        %v918 = vunpack.c.l.s4 1983009808
        %v919 = vunpack.c.0.s8 %v918
        %v920 = vlaneseq
        %v921 = vshrl.u32 %v920, 7
        %v922 = vsub.s32 %v919, %v921
        %v923 = vrot.slane %v916, %v922
        %v924 = vcombine.low %v873, %v889
        %v926 = vunpack.c.l.s4 1983009808
        %v927 = vunpack.c.0.s8 %v926
        %v928 = vlaneseq
        %v929 = vshrl.u32 %v928, 7
        %v930 = vsub.s32 %v927, %v929
        %v931 = vrot.slane %v924, %v930
        %v932 = vcombine.low %v923, %v931
        %v934 = vunpack.c.l.s4 1934713408
        %v935 = vunpack.c.0.s8 %v934
        %v936 = vlaneseq
        %v937 = vshrl.u32 %v936, 7
        %v938 = vsub.s32 %v935, %v937
        %v939 = vrot.slane %v932, %v938
        %v940 = vcombine.high %v939, 0
        %v943 = vpack.i.b16 %v939, %v914
        %v945 = vshrl.u32 %v914, 16
        %v946 = vshrl.u32 %v939, 16
        %v947 = vpack.i.b16 %v946, %v945
        %v951 = vpack.i.b16 %v940, %v915
        %v953 = vshrl.u32 %v915, 16
        %v954 = vshrl.u32 %v940, 16
        %v955 = vpack.i.b16 %v954, %v953
        %957 = vst.msk [vmem:[%s326] sm:$0xf] %vm600, %v943
        %958 = vst.msk [vmem:[%s326 + $0x4] sm:$0xf] %vm600, %v947
        %959 = vst.msk [vmem:[%s326 + $0x8] sm:$0xf] %vm600, %v951
        %960 = vst.msk [vmem:[%s326 + $0xc] sm:$0xf] %vm600, %v955
        %s961 = sand.u32 %s147, 1
        %s962 = scalar_lea.sflag [#allocation4], %s961
        %s963 = sand.u32 %s147, 1
        %s964 = smul.addr %s963, 16
        %s965 = scalar_lea.vmem [#allocation7], %s964
        %s966 = sand.u32 %s29, 1
        %s967 = scalar_lea.sflag [#allocation9], %s966
        %s968 = sand.u32 %s173, 1
        %s969 = smul.addr %s968, 16
        %s970 = scalar_lea.vmem [#allocation8], %s969
        %s971 = sand.u32 %s29, 1
        %s972 = scalar_lea.sflag [#allocation9], %s971
        %s973 = sand.u32 %s199, 1
        %s974 = smul.addr %s973, 16
        %s975 = scalar_lea.vmem [#allocation10], %s974
        // Predicated region
        $region49: #{tpu_custom_call.1} parent=39 // pred_check
          %p976 = pneg %p157
        $region50: #{tpu_custom_call.1} parent=39 // pred_check_branch
          %978 = sbr.rel (%p976) target = $region52
        $region51: #{tpu_custom_call.1} parent=39 // pred_region
          %s980 = ssub.s32 256, 256
          %981 = vsyncadd %s962, %s980
          %s982 = smul.addr %s29, 4
          %s983 = smul.addr %s982, 64
          %s984 = scalar_lea.hbm %s5, %s983
          %s985 = sshll.u32 %s965, 4
          %s986 = int_to_ptr.vmem [resolvable:$true] %s985
          %991 = dma.vmem_to_hbm [thread:$0]  %s986, 256, %s984, %s962, 64, 64, 4
        $region52: #{tpu_custom_call.1} parent=39 // pred_fallthru
          _
        // Predicated region
        $region53: #{tpu_custom_call.1} parent=39 // pred_check
          %p992 = pneg %p183
        $region54: #{tpu_custom_call.1} parent=39 // pred_check_branch
          %994 = sbr.rel (%p992) target = $region56
        $region55: #{tpu_custom_call.1} parent=39 // pred_region
          %s996 = ssub.s32 256, 256
          %997 = vsyncadd %s967, %s996
          %s998 = smul.addr %s29, 4
          %s999 = smul.addr %s998, 64
          %s1000 = scalar_lea.hbm %s6, %s999
          %s1001 = sshll.u32 %s970, 4
          %s1002 = int_to_ptr.vmem [resolvable:$true] %s1001
          %1007 = dma.vmem_to_hbm [thread:$0]  %s1002, 256, %s1000, %s967, 64, 64, 4
        $region56: #{tpu_custom_call.1} parent=39 // pred_fallthru
          _
        // Predicated region
        $region57: #{tpu_custom_call.1} parent=39 // pred_check
          %p1008 = pneg %p209
        $region58: #{tpu_custom_call.1} parent=39 // pred_check_branch
          %1010 = sbr.rel (%p1008) target = $region60
        $region59: #{tpu_custom_call.1} parent=39 // pred_region
          %s1012 = ssub.s32 256, 256
          %1013 = vsyncadd %s972, %s1012
          %s1014 = smul.addr %s29, 4
          %s1015 = smul.addr %s1014, 64
          %s1016 = scalar_lea.hbm %s7, %s1015
          %s1017 = sshll.u32 %s975, 4
          %s1018 = int_to_ptr.vmem [resolvable:$true] %s1017
          %1023 = dma.vmem_to_hbm [thread:$0]  %s1018, 256, %s1016, %s972, 64, 64, 4
        $region60: #{tpu_custom_call.1} parent=39 // pred_fallthru
          _
      $region40: #{tpu_custom_call.1} parent=5 // pred_fallthru
        _
      %p1024 = scmp.le.s32.totalorder 2, %s24
      // Predicated region
      $region61: #{tpu_custom_call.1} parent=5 // pred_check
        %p1025 = pneg %p1024
      $region62: #{tpu_custom_call.1} parent=5 // pred_check_branch
        %1027 = sbr.rel (%p1025) target = $region64
      $region63: #{tpu_custom_call.1} parent=5 // pred_region
        %s1028 = ssub.s32 %s24, 2
        // Predicated region
        $region65: #{tpu_custom_call.1} parent=63 // pred_check
          %p1029 = pneg %p163
        $region66: #{tpu_custom_call.1} parent=63 // pred_check_branch
          %1031 = sbr.rel (%p1029) target = $region68
        $region67: #{tpu_custom_call.1} parent=63 // pred_region
          %s1032 = sand.u32 %s148, 1
          %s1033 = scalar_lea.sflag [#allocation4], %s1032
          %s1034 = sand.u32 %s148, 1
          %s1035 = smul.addr %s1034, 16
          %s1036 = scalar_lea.vmem [#allocation7], %s1035
          %1037 = dma.done %s1033, 256
        $region68: #{tpu_custom_call.1} parent=63 // pred_fallthru
          _
        // Predicated region
        $region69: #{tpu_custom_call.1} parent=63 // pred_check
          %p1038 = pneg %p189
        $region70: #{tpu_custom_call.1} parent=63 // pred_check_branch
          %1040 = sbr.rel (%p1038) target = $region72
        $region71: #{tpu_custom_call.1} parent=63 // pred_region
          %s1041 = sand.u32 %s30, 1
          %s1042 = scalar_lea.sflag [#allocation9], %s1041
          %s1043 = sand.u32 %s174, 1
          %s1044 = smul.addr %s1043, 16
          %s1045 = scalar_lea.vmem [#allocation8], %s1044
          %1046 = dma.done %s1042, 256
        $region72: #{tpu_custom_call.1} parent=63 // pred_fallthru
          _
        // Predicated region
        $region73: #{tpu_custom_call.1} parent=63 // pred_check
          %p1047 = pneg %p215
        $region74: #{tpu_custom_call.1} parent=63 // pred_check_branch
          %1049 = sbr.rel (%p1047) target = $region76
        $region75: #{tpu_custom_call.1} parent=63 // pred_region
          %s1050 = sand.u32 %s30, 1
          %s1051 = scalar_lea.sflag [#allocation9], %s1050
          %s1052 = sand.u32 %s200, 1
          %s1053 = smul.addr %s1052, 16
          %s1054 = scalar_lea.vmem [#allocation10], %s1053
          %1055 = dma.done %s1051, 256
        $region76: #{tpu_custom_call.1} parent=63 // pred_fallthru
          _
      $region64: #{tpu_custom_call.1} parent=5 // pred_fallthru
        _
    $region6: #{tpu_custom_call.1} parent=1 // loop_footer
      %s28 = sadd.s32 1, %s24
    $region7: #{tpu_custom_call.1} parent=1 // loop_footer_branch
      %23 = sbr.rel target = $region3
    $region8: #{tpu_custom_call.1} parent=1 // loop_exit
      _
    %1056 = vsyncpa [#allocation3], 1
    %s1057 = scalar_lea.sflag [#allocation3], 1
    %1058 = vsyncpa %s1057, 1
    %1059 = vsyncpa [#allocation6], 1
    %1060 = vsyncpa [#allocation4], 1
    %s1061 = scalar_lea.sflag [#allocation4], 1
    %1062 = vsyncpa %s1061, 1
    %1063 = vsyncpa [#allocation9], 1
    %s1064 = scalar_lea.sflag [#allocation9], 1
    %1065 = vsyncpa %s1064, 1

</llo_original>
